<compile_context>
chip_gen: v7x
topology: tpu7x:2x2x1
jax: 0.10.0
libtpu: 0.0.40
codegen_flags: <defaults>
</compile_context>

<pallas_src>
import functools

import jax
import jax.numpy as jnp
from jax.experimental import pallas as pl
from jax.experimental.pallas import tpu as pltpu


def _add_kernel(x_ref, y_ref, o_ref):
    # Whole tile resident in VMEM; single VPU elementwise add.
    o_ref[...] = x_ref[...] + y_ref[...]


# Per-dtype sublane granularity (second-to-last dim of a vreg).
_SUBLANE_MULT = {4: 8, 2: 16, 1: 32}

# Below this many bytes per operand we just use one full-array block
# (no tiling win possible; avoids the (8,128) divisibility constraint).
_SMALL_BYTES = 1 << 20  # 1 MiB


def _add_small(x2: jax.Array, y2: jax.Array) -> jax.Array:
    # Single grid point, full-array blocks (block_shape == array shape is
    # always a legal TPU block).
    return pl.pallas_call(
        _add_kernel,
        out_shape=jax.ShapeDtypeStruct(x2.shape, x2.dtype),
    )(x2, y2)


def _add_tiled(x2: jax.Array, y2: jax.Array) -> jax.Array:
    M, N = x2.shape
    itemsize = jnp.dtype(x2.dtype).itemsize
    sub = _SUBLANE_MULT.get(itemsize, 8)

    # Lane-dense tiles: TN a multiple of 128 (target 2048 lanes), TM a multiple
    # of the sublane granularity (target 512 rows for f32).
    tn = min(N, 2048)
    tm = min(M, 512 * (4 // max(itemsize, 1)) if itemsize <= 4 else 512)
    tm = max(sub, (tm // sub) * sub)
    tn = max(128, (tn // 128) * 128)

    grid = (pl.cdiv(M, tm), pl.cdiv(N, tn))

    # 3 streams (x, y, out) x 2 pipeline buffers x tile bytes; cap well under
    # v7x's 64 MiB physical VMEM.
    tile_bytes = tm * tn * itemsize
    vmem_limit = min(48 << 20, max(8 << 20, 8 * tile_bytes))

    return pl.pallas_call(
        _add_kernel,
        out_shape=jax.ShapeDtypeStruct((M, N), x2.dtype),
        grid=grid,
        in_specs=[
            pl.BlockSpec((tm, tn), lambda i, j: (i, j)),
            pl.BlockSpec((tm, tn), lambda i, j: (i, j)),
        ],
        out_specs=pl.BlockSpec((tm, tn), lambda i, j: (i, j)),
        compiler_params=pltpu.CompilerParams(
            dimension_semantics=("parallel", "parallel"),
            vmem_limit_bytes=int(vmem_limit),
        ),
    )(x2, y2)


@functools.partial(jax.jit, static_argnames=())
def elementwise_add(x: jax.Array, y: jax.Array) -> jax.Array:
    """out = x + y, matching torch's ElementwiseAdd.forward for equal shapes."""
    assert x.shape == y.shape and x.dtype == y.dtype
    orig_shape = x.shape

    # Collapse to 2D (M, N) with the original last dim on lanes; elementwise
    # add is layout-agnostic so this is purely a tiling convenience.
    if x.ndim == 0:
        x2 = x.reshape(1, 1)
        y2 = y.reshape(1, 1)
    else:
        n = x.shape[-1] if x.shape[-1] > 0 else 1
        m = max(x.size // max(n, 1), 1)
        x2 = x.reshape(m, n)
        y2 = y.reshape(m, n)

    M, N = x2.shape
    itemsize = jnp.dtype(x.dtype).itemsize
    sub = _SUBLANE_MULT.get(itemsize, 8)

    small = (M * N * itemsize) <= _SMALL_BYTES
    if small or (M % sub != 0) or (N % 128 != 0):
        out2 = _add_small(x2, y2)
    else:
        out2 = _add_tiled(x2, y2)

    return out2.reshape(orig_shape)


if __name__ == "__main__":
    key = jax.random.PRNGKey(0)
    k1, k2, k3, k4 = jax.random.split(key, 4)

    # 1) The module's spec shape: ElementwiseAdd.get_random_inputs() -> (1, 3).
    x_small = jax.random.normal(k1, (1, 3), dtype=jnp.float32)
    y_small = jax.random.normal(k2, (1, 3), dtype=jnp.float32)
    out_small = elementwise_add(x_small, y_small)
    jax.block_until_ready(out_small)
    assert jnp.allclose(out_small, x_small + y_small, atol=1e-6, rtol=1e-6)

    # 2) A larger shape to exercise the tiled, pipelined path
    #    (grid = (2, 2) with (512, 2048) lane-dense tiles).
    x_big = jax.random.normal(k3, (1024, 4096), dtype=jnp.float32)
    y_big = jax.random.normal(k4, (1024, 4096), dtype=jnp.float32)
    out_big = elementwise_add(x_big, y_big)
    jax.block_until_ready(out_big)
    assert jnp.allclose(out_big, x_big + y_big, atol=1e-6, rtol=1e-6)

    print("KERNEL_OK")
</pallas_src>

<mosaic_0001>
module attributes {stable_mosaic.version = 11 : i64} {
  func.func @_add_kernel(%arg0: memref<1x3xf32, #tpu.memory_space<vmem>>, %arg1: memref<1x3xf32, #tpu.memory_space<vmem>>, %arg2: memref<1x3xf32, #tpu.memory_space<vmem>>) attributes {dimension_semantics = [], scalar_prefetch = 0 : i64, scratch_operands = 0 : i64, tpu.core_type = #tpu.core_type<tc>} {
    %c0 = arith.constant 0 : index
    %c0_0 = arith.constant 0 : index
    %0 = vector.load %arg0[%c0, %c0_0] : memref<1x3xf32, #tpu.memory_space<vmem>>, vector<1x3xf32>
    %c0_1 = arith.constant 0 : index
    %c0_2 = arith.constant 0 : index
    %1 = vector.load %arg1[%c0_1, %c0_2] : memref<1x3xf32, #tpu.memory_space<vmem>>, vector<1x3xf32>
    %2 = arith.addf %0, %1 : vector<1x3xf32>
    %c0_3 = arith.constant 0 : index
    %c0_4 = arith.constant 0 : index
    %3 = vector.load %arg2[%c0_3, %c0_4] : memref<1x3xf32, #tpu.memory_space<vmem>>, vector<1x3xf32>
    tpu.vector_store %arg2[%c0_3, %c0_4], %2 {strides = array<i32>} : memref<1x3xf32, #tpu.memory_space<vmem>>, vector<1x3xf32>,
    return
  }
}

</mosaic_0001>

<llo_original>
// kernel: elementwise_add.1
$region0: #{elementwise_add.1}
  #allocation0 [shape = 'u32[]', space=smem, size = 0x4, offset = 0x4, fixed_abs, tag = 'smem constant byte address 0x4 - core index']
  #allocation1 [shape = 'u32[144,128]{1,0:T(1,128)}', space=vmem, size = 0x12000, scoped, tag = 'internal scratch']
  %s0 = inlined_call_operand.hbm [shape: f32[1,3], index: 0, kind: input, shape index: {}]
  %s1 = inlined_call_operand.vmem [shape: f32[1,3], index: 1, kind: input, shape index: {}]
  %s2 = inlined_call_operand.hbm [shape: f32[1,3], index: 2, kind: output, shape index: {}]
  %s3 = sld [smem:[#allocation0]]
  $region22: #{elementwise_add.1} parent=0
    _
  %s5 = ssub.s32 1, %s3
  %s6 = scalar_select 0, %s5, %s3
  $region1: #{elementwise_add.1} parent=0
    #allocation2 [shape = 'u8[512]{0}', space=vmem, size = 0x400, scoped, tag = 'input window, operand 0, single buffered']
    #allocation3 [shape = 's32[1]{0}', space=sflag, size = 0x4, scoped, tag = 'scoped memory for elementwise_add.1']
    #allocation4 [shape = 's32[1]{0}', space=sflag, size = 0x4, scoped, tag = 'scoped memory for elementwise_add.1']
    #allocation5 [shape = 'u8[512]{0}', space=vmem, size = 0x400, scoped, tag = 'output window, operand 0, single buffered']
    %7 = vsyncpa [#allocation3], 0
    %8 = vsyncpa [#allocation4], 0
    // Predicated region
    $region2: #{elementwise_add.1} parent=1 // pred_check
      _
    $region3: #{elementwise_add.1} parent=1 // pred_check_branch
      %10 = sbr.rel (0) target = $region5
    $region4: #{elementwise_add.1} parent=1 // pred_region
      %s12 = ssub.s32 16, 16
      %13 = vsyncadd [#allocation3], %s12
      %s15 = sshll.u32 [#allocation2], 4
      %s16 = int_to_ptr.vmem [resolvable:$true] %s15
      %18 = dma.hbm_to_vmem [thread:$0]  %s0, 16, %s16, [#allocation3]
    $region5: #{elementwise_add.1} parent=1 // pred_fallthru
      _
    // Predicated region
    $region6: #{elementwise_add.1} parent=1 // pred_check
      _
    $region7: #{elementwise_add.1} parent=1 // pred_check_branch
      %20 = sbr.rel (0) target = $region9
    $region8: #{elementwise_add.1} parent=1 // pred_region
      _
    $region9: #{elementwise_add.1} parent=1 // pred_fallthru
      _
    // Predicated region
    $region10: #{elementwise_add.1} parent=1 // pred_check
      _
    $region11: #{elementwise_add.1} parent=1 // pred_check_branch
      %22 = sbr.rel (0) target = $region13
    $region12: #{elementwise_add.1} parent=1 // pred_region
      %23 = dma.done [#allocation3], 16
    $region13: #{elementwise_add.1} parent=1 // pred_fallthru
      _
    %v24 = vld [vmem:[#allocation2] sm:$0x1]
    %v25 = vld [vmem:[%s1] sm:$0x1]
    %v26 = vadd.f32 %v24, %v25
    %vm27 = vcmask 16384
    %28 = vst.msk [vmem:[#allocation5] sm:$0x1] %vm27, %v26
    // Predicated region
    $region14: #{elementwise_add.1} parent=1 // pred_check
      _
    $region15: #{elementwise_add.1} parent=1 // pred_check_branch
      %30 = sbr.rel (0) target = $region17
    $region16: #{elementwise_add.1} parent=1 // pred_region
      %s32 = ssub.s32 16, 16
      %33 = vsyncadd [#allocation4], %s32
      %s35 = sshll.u32 [#allocation5], 4
      %s36 = int_to_ptr.vmem [resolvable:$true] %s35
      %38 = dma.vmem_to_hbm [thread:$0]  %s36, 16, %s2, [#allocation4]
    $region17: #{elementwise_add.1} parent=1 // pred_fallthru
      _
    // Predicated region
    $region18: #{elementwise_add.1} parent=1 // pred_check
      _
    $region19: #{elementwise_add.1} parent=1 // pred_check_branch
      %40 = sbr.rel (0) target = $region21
    $region20: #{elementwise_add.1} parent=1 // pred_region
      %41 = dma.done [#allocation4], 16
    $region21: #{elementwise_add.1} parent=1 // pred_fallthru
      _
    %42 = vsyncpa [#allocation3], 1
    %43 = vsyncpa [#allocation4], 1

</llo_original>
